<compile_context>
chip_gen: v6e
topology: v6e:2x2x1
jax: 0.10.0
libtpu: 0.0.40
codegen_flags: <defaults>
</compile_context>

<pallas_src>
import jax
import jax.numpy as jnp
from jax.experimental import pallas as pl
from jax.experimental.pallas import tpu as pltpu

HARD_FACTOR = 0.0  # matches TripletLoss_Soft.__init__


def _triplet_soft_kernel(xa_ref, xg_ref, sqg_ref, lab_a_ref, lab_g_ref, o_ref):
    xa = xa_ref[...]                                   # (tm, D)    native dtype
    xg = xg_ref[...]                                   # (n_pad, D) native dtype

    # Anchor-tile x gallery gram on the MXU, f32 accumulate.
    gram = jax.lax.dot_general(
        xa, xg,
        dimension_numbers=(((1,), (1,)), ((), ())),
        preferred_element_type=jnp.float32,
    )                                                  # (tm, n_pad)

    # Anchor squared norms: O(tm*D) VPU + one lane reduce.
    xa_f = xa.astype(jnp.float32)
    sq_a = jnp.sum(xa_f * xa_f, axis=1, keepdims=True)  # (tm, 1)

    sq_g = sqg_ref[...]                                  # (1, n_pad) f32 (hoisted)

    # Mine on m = sq_g - 2*gram: the per-row constant sq_a does not change the
    # row-wise argmax/argmin, so we add it only to the selected values below.
    m = sq_g - 2.0 * gram                                # (tm, n_pad)

    lab_a = lab_a_ref[...]                               # (tm, 1)    int32
    lab_g = lab_g_ref[...]                               # (1, n_pad) int32
    # Padded rows/cols carry label -1; real reID labels are >= 0, so padded
    # gallery columns never match a real anchor.
    is_pos = lab_a == lab_g
    is_neg = (lab_a != lab_g) & (lab_g >= 0)

    neg_inf = jnp.float32(-jnp.inf)
    pos_inf = jnp.float32(jnp.inf)
    ap2 = jnp.max(jnp.where(is_pos, m, neg_inf), axis=1, keepdims=True) + sq_a
    an2 = jnp.min(jnp.where(is_neg, m, pos_inf), axis=1, keepdims=True) + sq_a

    # Clamp (as in the torch reference) + sqrt only on the selected vectors.
    dist_ap = jnp.sqrt(jnp.maximum(ap2, 1e-12)) * (1.0 + HARD_FACTOR)
    dist_an = jnp.sqrt(jnp.maximum(an2, 1e-12)) * (1.0 - HARD_FACTOR)

    # SoftMarginLoss(dist_an - dist_ap, y=1) == softplus(dist_ap - dist_an)
    t = dist_ap - dist_an
    sp = jnp.maximum(t, 0.0) + jnp.log1p(jnp.exp(-jnp.abs(t)))  # stable softplus

    # Zero padded anchors (label -1) so the wrapper's sum / N is exact.
    o_ref[...] = jnp.where(lab_a >= 0, sp, 0.0)


def _ceil_to(v, m):
    return -(-v // m) * m


def triplet_loss_soft(global_feat, labels, normalize_feature=False):
    """global_feat: [N, D], labels: [N] int -> scalar float32 loss."""
    if normalize_feature:
        # Optional path of the torch module; cheap elementwise JAX glue.
        nrm = jnp.sqrt(jnp.sum(global_feat.astype(jnp.float32) ** 2,
                               axis=-1, keepdims=True))
        global_feat = (global_feat / (nrm + 1e-12)).astype(global_feat.dtype)

    n, d = global_feat.shape
    itemsize = jnp.dtype(global_feat.dtype).itemsize
    # Sub-32-bit dtypes pack along sublanes: bf16 min tile is (16,128), 8-bit (32,128).
    align = {1: 32, 2: 16}.get(itemsize, 8)

    # VMEM capacity of this generation (headroom-adjusted); fall back to the
    # smallest (v7x, 64 MiB) if the query is unavailable.
    try:
        vmem_cap = int(pltpu.get_tpu_info().vmem_capacity_bytes)
    except Exception:  # pragma: no cover - conservative fallback
        vmem_cap = 64 * 1024 * 1024
    hard_cap = 100 * 1024 * 1024 if vmem_cap > 96 * 1024 * 1024 else 56 * 1024 * 1024
    budget = min(int(vmem_cap * 0.85), hard_cap)

    def _vmem_need(tm_, n_pad_, gallery_bufs):
        gallery = gallery_bufs * n_pad_ * d * itemsize          # resident gallery
        anchor = 2 * tm_ * d * itemsize                         # double-buffered tile
        planes = 3 * tm_ * n_pad_ * 4                           # gram + masked temps
        small = 6 * n_pad_ * 4 + 8 * tm_ * 4                    # norms, labels, out
        return gallery + anchor + planes + small

    # Anchor tile: up to 256 rows (fills v6e/v7x's 256-wide MXU); split small
    # batches into >= 2 grid steps so both v7x TensorCores get work; shrink
    # until the single-buffered working set fits the VMEM budget.
    cand = _ceil_to(n, align)
    tm = min(256, cand)
    if tm >= cand and n > align:
        tm = _ceil_to(-(-n // 2), align)
    while tm > align and _vmem_need(tm, _ceil_to(n, tm), 1) > budget:
        tm = max(align, _ceil_to(tm // 2, align))

    n_pad = _ceil_to(n, tm)
    g = n_pad // tm
    pad = n_pad - n

    x_pad = jnp.pad(global_feat, ((0, pad), (0, 0))) if pad else global_feat
    lab = labels.astype(jnp.int32)
    lab_pad = jnp.pad(lab, (0, pad), constant_values=-1) if pad else lab
    lab_col = lab_pad.reshape(n_pad, 1)
    lab_row = lab_pad.reshape(1, n_pad)

    # Hoisted: gallery squared norms, lane-dense (1, n_pad) f32, computed once.
    sq_g = jnp.sum(x_pad.astype(jnp.float32) ** 2, axis=1).reshape(1, n_pad)

    def _run(single_buffer):
        resident = dict(pipeline_mode=pl.Buffered(1)) if single_buffer else {}
        gallery_bufs = 1 if single_buffer else 2
        vmem_limit = int(min(
            hard_cap,
            max(_vmem_need(tm, n_pad, gallery_bufs) * 5 // 4, 16 * 1024 * 1024)))
        return pl.pallas_call(
            _triplet_soft_kernel,
            out_shape=jax.ShapeDtypeStruct((n_pad, 1), jnp.float32),
            grid=(g,),
            in_specs=[
                pl.BlockSpec((tm, d), lambda i: (i, 0)),                 # anchor rows
                pl.BlockSpec((n_pad, d), lambda i: (0, 0), **resident),  # gallery (resident)
                pl.BlockSpec((1, n_pad), lambda i: (0, 0), **resident),  # gallery sq norms
                pl.BlockSpec((tm, 1), lambda i: (i, 0)),                 # anchor labels
                pl.BlockSpec((1, n_pad), lambda i: (0, 0), **resident),  # gallery labels
            ],
            out_specs=pl.BlockSpec((tm, 1), lambda i: (i, 0)),
            compiler_params=pltpu.CompilerParams(
                dimension_semantics=("parallel",),
                vmem_limit_bytes=vmem_limit,
            ),
        )(x_pad, x_pad, sq_g, lab_col, lab_row)

    try:
        per_anchor = _run(True)
    except Exception:
        # Fallback if this jax version rejects single-buffered (Buffered(1))
        # resident blocks: identical kernel with default double-buffering.
        per_anchor = _run(False)

    return jnp.sum(per_anchor) / jnp.float32(n)


def _reference_loss(global_feat, labels):
    # Pure-JAX reference mirroring the PyTorch module.
    x = global_feat.astype(jnp.float32)
    sq = jnp.sum(x * x, axis=1, keepdims=True)
    gram = jnp.dot(x, x.T, precision=jax.lax.Precision.HIGHEST)
    dist = jnp.sqrt(jnp.maximum(sq + sq.T - 2.0 * gram, 1e-12))
    is_pos = labels[:, None] == labels[None, :]
    dist_ap = jnp.max(jnp.where(is_pos, dist, -jnp.inf), axis=1)
    dist_an = jnp.min(jnp.where(is_pos, jnp.inf, dist), axis=1)
    dist_ap = dist_ap * (1.0 + HARD_FACTOR)
    dist_an = dist_an * (1.0 - HARD_FACTOR)
    return jnp.mean(jax.nn.softplus(dist_ap - dist_an))


if __name__ == "__main__":
    key = jax.random.PRNGKey(0)
    N, D = 8, 32
    global_feat = jax.random.normal(key, (N, D), dtype=jnp.float32)
    # 4 identities, 2 samples each (same-count-per-class assumption of the module).
    labels = jnp.array([0, 0, 1, 1, 2, 2, 3, 3], dtype=jnp.int32)

    loss = jax.block_until_ready(triplet_loss_soft(global_feat, labels))
    ref = _reference_loss(global_feat, labels)
    assert jnp.allclose(loss, ref, atol=1e-5, rtol=1e-5), (loss, ref)
    print("KERNEL_OK")
</pallas_src>

<mosaic_0001>
module attributes {stable_mosaic.version = 11 : i64} {
  func.func @_triplet_soft_kernel(%arg0: i32, %arg1: memref<8x32xf32, #tpu.memory_space<vmem>>, %arg2: memref<8x32xf32, #tpu.memory_space<vmem>>, %arg3: memref<1x8xf32, #tpu.memory_space<vmem>>, %arg4: memref<8x1xi32, #tpu.memory_space<vmem>>, %arg5: memref<1x8xi32, #tpu.memory_space<vmem>>, %arg6: memref<8x1xf32, #tpu.memory_space<vmem>>) attributes {dimension_semantics = [#tpu.dimension_semantics<parallel>], iteration_bounds = array<i64: 1>, scalar_prefetch = 0 : i64, scratch_operands = 0 : i64, tpu.core_type = #tpu.core_type<tc>, window_params = [{transform_indices = @transform_0, window_bounds = array<i64: 8, 32>}, {pipeline_mode = #tpu.pipeline_mode<synchronous>, transform_indices = @transform_1, window_bounds = array<i64: 8, 32>}, {pipeline_mode = #tpu.pipeline_mode<synchronous>, transform_indices = @transform_2, window_bounds = array<i64: 1, 8>}, {transform_indices = @transform_3, window_bounds = array<i64: 8, 1>}, {pipeline_mode = #tpu.pipeline_mode<synchronous>, transform_indices = @transform_4, window_bounds = array<i64: 1, 8>}, {transform_indices = @transform_5, window_bounds = array<i64: 8, 1>}]} {
    %c0 = arith.constant 0 : index
    %c0_0 = arith.constant 0 : index
    %0 = vector.load %arg1[%c0, %c0_0] : memref<8x32xf32, #tpu.memory_space<vmem>>, vector<8x32xf32>
    %c0_1 = arith.constant 0 : index
    %c0_2 = arith.constant 0 : index
    %1 = vector.load %arg2[%c0_1, %c0_2] : memref<8x32xf32, #tpu.memory_space<vmem>>, vector<8x32xf32>
    %cst = arith.constant dense<0.000000e+00> : vector<8x8xf32>
    %2 = tpu.matmul %0, %1, %cst {dimension_numbers = #tpu.dot_dimension_numbers<[1], [1], [0], [0], [0, 0, 1, 0], [], []>} : vector<8x32xf32>, vector<8x32xf32>, vector<8x8xf32> -> vector<8x8xf32>
    %3 = arith.mulf %0, %0 : vector<8x32xf32>
    %cst_3 = arith.constant dense<0.000000e+00> : vector<8xf32>
    %4 = vector.multi_reduction <add>, %3, %cst_3 [1] : vector<8x32xf32> to vector<8xf32>
    %5 = vector.shape_cast %4 : vector<8xf32> to vector<8x1xf32>
    %c0_4 = arith.constant 0 : index
    %c0_5 = arith.constant 0 : index
    %6 = vector.load %arg3[%c0_4, %c0_5] : memref<1x8xf32, #tpu.memory_space<vmem>>, vector<1x8xf32>
    %cst_6 = arith.constant 2.000000e+00 : f32
    %7 = vector.broadcast %cst_6 : f32 to vector<8x8xf32>
    %8 = arith.mulf %7, %2 : vector<8x8xf32>
    %9 = vector.broadcast %6 : vector<1x8xf32> to vector<8x8xf32>
    %10 = arith.subf %9, %8 : vector<8x8xf32>
    %c0_7 = arith.constant 0 : index
    %c0_8 = arith.constant 0 : index
    %11 = vector.load %arg4[%c0_7, %c0_8] : memref<8x1xi32, #tpu.memory_space<vmem>>, vector<8x1xi32>
    %c0_9 = arith.constant 0 : index
    %c0_10 = arith.constant 0 : index
    %12 = vector.load %arg5[%c0_9, %c0_10] : memref<1x8xi32, #tpu.memory_space<vmem>>, vector<1x8xi32>
    %13 = vector.broadcast %11 : vector<8x1xi32> to vector<8x8xi32>
    %14 = vector.broadcast %12 : vector<1x8xi32> to vector<8x8xi32>
    %15 = arith.cmpi eq, %13, %14 : vector<8x8xi32>
    %16 = vector.broadcast %11 : vector<8x1xi32> to vector<8x8xi32>
    %17 = vector.broadcast %12 : vector<1x8xi32> to vector<8x8xi32>
    %18 = arith.cmpi ne, %16, %17 : vector<8x8xi32>
    %c0_i32 = arith.constant 0 : i32
    %19 = vector.broadcast %c0_i32 : i32 to vector<1x8xi32>
    %20 = arith.cmpi sge, %12, %19 : vector<1x8xi32>
    %21 = vector.broadcast %20 : vector<1x8xi1> to vector<8x8xi1>
    %22 = arith.andi %18, %21 : vector<8x8xi1>
    %cst_11 = arith.constant 0xFF800000 : f32
    %23 = vector.broadcast %cst_11 : f32 to vector<8x8xf32>
    %24 = arith.select %15, %10, %23 : vector<8x8xi1>, vector<8x8xf32>
    %cst_12 = arith.constant dense<0xFF800000> : vector<8xf32>
    %25 = vector.multi_reduction <maximumf>, %24, %cst_12 [1] : vector<8x8xf32> to vector<8xf32>
    %26 = vector.shape_cast %25 : vector<8xf32> to vector<8x1xf32>
    %27 = arith.addf %26, %5 : vector<8x1xf32>
    %cst_13 = arith.constant 0x7F800000 : f32
    %28 = vector.broadcast %cst_13 : f32 to vector<8x8xf32>
    %29 = arith.select %22, %10, %28 : vector<8x8xi1>, vector<8x8xf32>
    %cst_14 = arith.constant dense<0x7F800000> : vector<8xf32>
    %30 = vector.multi_reduction <minimumf>, %29, %cst_14 [1] : vector<8x8xf32> to vector<8xf32>
    %31 = vector.shape_cast %30 : vector<8xf32> to vector<8x1xf32>
    %32 = arith.addf %31, %5 : vector<8x1xf32>
    %cst_15 = arith.constant 9.99999996E-13 : f32
    %33 = vector.broadcast %cst_15 : f32 to vector<8x1xf32>
    %34 = arith.maximumf %27, %33 : vector<8x1xf32>
    %35 = math.sqrt %34 : vector<8x1xf32>
    %cst_16 = arith.constant 1.000000e+00 : f32
    %36 = vector.broadcast %cst_16 : f32 to vector<8x1xf32>
    %37 = arith.mulf %35, %36 : vector<8x1xf32>
    %cst_17 = arith.constant 9.99999996E-13 : f32
    %38 = vector.broadcast %cst_17 : f32 to vector<8x1xf32>
    %39 = arith.maximumf %32, %38 : vector<8x1xf32>
    %40 = math.sqrt %39 : vector<8x1xf32>
    %cst_18 = arith.constant 1.000000e+00 : f32
    %41 = vector.broadcast %cst_18 : f32 to vector<8x1xf32>
    %42 = arith.mulf %40, %41 : vector<8x1xf32>
    %43 = arith.subf %37, %42 : vector<8x1xf32>
    %cst_19 = arith.constant 0.000000e+00 : f32
    %44 = vector.broadcast %cst_19 : f32 to vector<8x1xf32>
    %45 = arith.maximumf %43, %44 : vector<8x1xf32>
    %46 = math.absf %43 : vector<8x1xf32>
    %cst_20 = arith.constant 0.000000e+00 : f32
    %47 = vector.broadcast %cst_20 : f32 to vector<8x1xf32>
    %48 = arith.subf %47, %46 : vector<8x1xf32>
    %49 = math.exp %48 : vector<8x1xf32>
    %50 = math.log1p %49 : vector<8x1xf32>
    %51 = arith.addf %45, %50 : vector<8x1xf32>
    %c0_i32_21 = arith.constant 0 : i32
    %52 = vector.broadcast %c0_i32_21 : i32 to vector<8x1xi32>
    %53 = arith.cmpi sge, %11, %52 : vector<8x1xi32>
    %cst_22 = arith.constant 0.000000e+00 : f32
    %54 = vector.broadcast %cst_22 : f32 to vector<8x1xf32>
    %55 = arith.select %53, %51, %54 : vector<8x1xi1>, vector<8x1xf32>
    %c0_23 = arith.constant 0 : index
    %c0_24 = arith.constant 0 : index
    %56 = vector.load %arg6[%c0_23, %c0_24] : memref<8x1xf32, #tpu.memory_space<vmem>>, vector<8x1xf32>
    tpu.vector_store %arg6[%c0_23, %c0_24], %55 {strides = array<i32>} : memref<8x1xf32, #tpu.memory_space<vmem>>, vector<8x1xf32>,
    return
  }
  func.func @transform_0(%arg0: i32) -> (i32, i32) {
    %c0_i32 = arith.constant 0 : i32
    %c0_i32_0 = arith.constant 0 : i32
    return %arg0, %c0_i32 : i32, i32
  }
  func.func @transform_1(%arg0: i32) -> (i32, i32) {
    %c0_i32 = arith.constant 0 : i32
    %c0_i32_0 = arith.constant 0 : i32
    %c0_i32_1 = arith.constant 0 : i32
    return %c0_i32, %c0_i32_0 : i32, i32
  }
  func.func @transform_2(%arg0: i32) -> (i32, i32) {
    %c0_i32 = arith.constant 0 : i32
    %c0_i32_0 = arith.constant 0 : i32
    %c0_i32_1 = arith.constant 0 : i32
    return %c0_i32, %c0_i32_0 : i32, i32
  }
  func.func @transform_3(%arg0: i32) -> (i32, i32) {
    %c0_i32 = arith.constant 0 : i32
    %c0_i32_0 = arith.constant 0 : i32
    return %arg0, %c0_i32 : i32, i32
  }
  func.func @transform_4(%arg0: i32) -> (i32, i32) {
    %c0_i32 = arith.constant 0 : i32
    %c0_i32_0 = arith.constant 0 : i32
    %c0_i32_1 = arith.constant 0 : i32
    return %c0_i32, %c0_i32_0 : i32, i32
  }
  func.func @transform_5(%arg0: i32) -> (i32, i32) {
    %c0_i32 = arith.constant 0 : i32
    %c0_i32_0 = arith.constant 0 : i32
    return %arg0, %c0_i32 : i32, i32
  }
}

module attributes {stable_mosaic.version = 11 : i64} {
  func.func @_triplet_soft_kernel(%arg0: i32, %arg1: memref<8x32xf32, #tpu.memory_space<vmem>>, %arg2: memref<8x32xf32, #tpu.memory_space<vmem>>, %arg3: memref<1x8xf32, #tpu.memory_space<vmem>>, %arg4: memref<8x1xi32, #tpu.memory_space<vmem>>, %arg5: memref<1x8xi32, #tpu.memory_space<vmem>>, %arg6: memref<8x1xf32, #tpu.memory_space<vmem>>) attributes {dimension_semantics = [#tpu.dimension_semantics<parallel>], iteration_bounds = array<i64: 1>, scalar_prefetch = 0 : i64, scratch_operands = 0 : i64, tpu.core_type = #tpu.core_type<tc>, window_params = [{transform_indices = @transform_0, window_bounds = array<i64: 8, 32>}, {pipeline_mode = #tpu.pipeline_mode<synchronous>, transform_indices = @transform_1, window_bounds = array<i64: 8, 32>}, {pipeline_mode = #tpu.pipeline_mode<synchronous>, transform_indices = @transform_2, window_bounds = array<i64: 1, 8>}, {transform_indices = @transform_3, window_bounds = array<i64: 8, 1>}, {pipeline_mode = #tpu.pipeline_mode<synchronous>, transform_indices = @transform_4, window_bounds = array<i64: 1, 8>}, {transform_indices = @transform_5, window_bounds = array<i64: 8, 1>}]} {
    %c0 = arith.constant 0 : index
    %c0_0 = arith.constant 0 : index
    %0 = vector.load %arg1[%c0, %c0_0] : memref<8x32xf32, #tpu.memory_space<vmem>>, vector<8x32xf32>
    %c0_1 = arith.constant 0 : index
    %c0_2 = arith.constant 0 : index
    %1 = vector.load %arg2[%c0_1, %c0_2] : memref<8x32xf32, #tpu.memory_space<vmem>>, vector<8x32xf32>
    %cst = arith.constant dense<0.000000e+00> : vector<8x8xf32>
    %2 = tpu.matmul %0, %1, %cst {dimension_numbers = #tpu.dot_dimension_numbers<[1], [1], [0], [0], [0, 0, 1, 0], [], []>} : vector<8x32xf32>, vector<8x32xf32>, vector<8x8xf32> -> vector<8x8xf32>
    %3 = arith.mulf %0, %0 : vector<8x32xf32>
    %cst_3 = arith.constant dense<0.000000e+00> : vector<8xf32>
    %4 = vector.multi_reduction <add>, %3, %cst_3 [1] : vector<8x32xf32> to vector<8xf32>
    %5 = vector.shape_cast %4 : vector<8xf32> to vector<8x1xf32>
    %c0_4 = arith.constant 0 : index
    %c0_5 = arith.constant 0 : index
    %6 = vector.load %arg3[%c0_4, %c0_5] : memref<1x8xf32, #tpu.memory_space<vmem>>, vector<1x8xf32>
    %cst_6 = arith.constant 2.000000e+00 : f32
    %7 = vector.broadcast %cst_6 : f32 to vector<8x8xf32>
    %8 = arith.mulf %7, %2 : vector<8x8xf32>
    %9 = vector.broadcast %6 : vector<1x8xf32> to vector<8x8xf32>
    %10 = arith.subf %9, %8 : vector<8x8xf32>
    %c0_7 = arith.constant 0 : index
    %c0_8 = arith.constant 0 : index
    %11 = vector.load %arg4[%c0_7, %c0_8] : memref<8x1xi32, #tpu.memory_space<vmem>>, vector<8x1xi32>
    %c0_9 = arith.constant 0 : index
    %c0_10 = arith.constant 0 : index
    %12 = vector.load %arg5[%c0_9, %c0_10] : memref<1x8xi32, #tpu.memory_space<vmem>>, vector<1x8xi32>
    %13 = vector.broadcast %11 : vector<8x1xi32> to vector<8x8xi32>
    %14 = vector.broadcast %12 : vector<1x8xi32> to vector<8x8xi32>
    %15 = arith.cmpi eq, %13, %14 : vector<8x8xi32>
    %16 = vector.broadcast %11 : vector<8x1xi32> to vector<8x8xi32>
    %17 = vector.broadcast %12 : vector<1x8xi32> to vector<8x8xi32>
    %18 = arith.cmpi ne, %16, %17 : vector<8x8xi32>
    %c0_i32 = arith.constant 0 : i32
    %19 = vector.broadcast %c0_i32 : i32 to vector<1x8xi32>
    %20 = arith.cmpi sge, %12, %19 : vector<1x8xi32>
    %21 = vector.broadcast %20 : vector<1x8xi1> to vector<8x8xi1>
    %22 = arith.andi %18, %21 : vector<8x8xi1>
    %cst_11 = arith.constant 0xFF800000 : f32
    %23 = vector.broadcast %cst_11 : f32 to vector<8x8xf32>
    %24 = arith.select %15, %10, %23 : vector<8x8xi1>, vector<8x8xf32>
    %cst_12 = arith.constant dense<0xFF800000> : vector<8xf32>
    %25 = vector.multi_reduction <maximumf>, %24, %cst_12 [1] : vector<8x8xf32> to vector<8xf32>
    %26 = vector.shape_cast %25 : vector<8xf32> to vector<8x1xf32>
    %27 = arith.addf %26, %5 : vector<8x1xf32>
    %cst_13 = arith.constant 0x7F800000 : f32
    %28 = vector.broadcast %cst_13 : f32 to vector<8x8xf32>
    %29 = arith.select %22, %10, %28 : vector<8x8xi1>, vector<8x8xf32>
    %cst_14 = arith.constant dense<0x7F800000> : vector<8xf32>
    %30 = vector.multi_reduction <minimumf>, %29, %cst_14 [1] : vector<8x8xf32> to vector<8xf32>
    %31 = vector.shape_cast %30 : vector<8xf32> to vector<8x1xf32>
    %32 = arith.addf %31, %5 : vector<8x1xf32>
    %cst_15 = arith.constant 9.99999996E-13 : f32
    %33 = vector.broadcast %cst_15 : f32 to vector<8x1xf32>
    %34 = arith.maximumf %27, %33 : vector<8x1xf32>
    %35 = math.sqrt %34 : vector<8x1xf32>
    %cst_16 = arith.constant 1.000000e+00 : f32
    %36 = vector.broadcast %cst_16 : f32 to vector<8x1xf32>
    %37 = arith.mulf %35, %36 : vector<8x1xf32>
    %cst_17 = arith.constant 9.99999996E-13 : f32
    %38 = vector.broadcast %cst_17 : f32 to vector<8x1xf32>
    %39 = arith.maximumf %32, %38 : vector<8x1xf32>
    %40 = math.sqrt %39 : vector<8x1xf32>
    %cst_18 = arith.constant 1.000000e+00 : f32
    %41 = vector.broadcast %cst_18 : f32 to vector<8x1xf32>
    %42 = arith.mulf %40, %41 : vector<8x1xf32>
    %43 = arith.subf %37, %42 : vector<8x1xf32>
    %cst_19 = arith.constant 0.000000e+00 : f32
    %44 = vector.broadcast %cst_19 : f32 to vector<8x1xf32>
    %45 = arith.maximumf %43, %44 : vector<8x1xf32>
    %46 = math.absf %43 : vector<8x1xf32>
    %cst_20 = arith.constant 0.000000e+00 : f32
    %47 = vector.broadcast %cst_20 : f32 to vector<8x1xf32>
    %48 = arith.subf %47, %46 : vector<8x1xf32>
    %49 = math.exp %48 : vector<8x1xf32>
    %50 = math.log1p %49 : vector<8x1xf32>
    %51 = arith.addf %45, %50 : vector<8x1xf32>
    %c0_i32_21 = arith.constant 0 : i32
    %52 = vector.broadcast %c0_i32_21 : i32 to vector<8x1xi32>
    %53 = arith.cmpi sge, %11, %52 : vector<8x1xi32>
    %cst_22 = arith.constant 0.000000e+00 : f32
    %54 = vector.broadcast %cst_22 : f32 to vector<8x1xf32>
    %55 = arith.select %53, %51, %54 : vector<8x1xi1>, vector<8x1xf32>
    %c0_23 = arith.constant 0 : index
    %c0_24 = arith.constant 0 : index
    %56 = vector.load %arg6[%c0_23, %c0_24] : memref<8x1xf32, #tpu.memory_space<vmem>>, vector<8x1xf32>
    tpu.vector_store %arg6[%c0_23, %c0_24], %55 {strides = array<i32>} : memref<8x1xf32, #tpu.memory_space<vmem>>, vector<8x1xf32>,
    return
  }
  func.func @transform_0(%arg0: i32) -> (i32, i32) {
    %c0_i32 = arith.constant 0 : i32
    %c0_i32_0 = arith.constant 0 : i32
    return %arg0, %c0_i32 : i32, i32
  }
  func.func @transform_1(%arg0: i32) -> (i32, i32) {
    %c0_i32 = arith.constant 0 : i32
    %c0_i32_0 = arith.constant 0 : i32
    %c0_i32_1 = arith.constant 0 : i32
    return %c0_i32, %c0_i32_0 : i32, i32
  }
  func.func @transform_2(%arg0: i32) -> (i32, i32) {
    %c0_i32 = arith.constant 0 : i32
    %c0_i32_0 = arith.constant 0 : i32
    %c0_i32_1 = arith.constant 0 : i32
    return %c0_i32, %c0_i32_0 : i32, i32
  }
  func.func @transform_3(%arg0: i32) -> (i32, i32) {
    %c0_i32 = arith.constant 0 : i32
    %c0_i32_0 = arith.constant 0 : i32
    return %arg0, %c0_i32 : i32, i32
  }
  func.func @transform_4(%arg0: i32) -> (i32, i32) {
    %c0_i32 = arith.constant 0 : i32
    %c0_i32_0 = arith.constant 0 : i32
    %c0_i32_1 = arith.constant 0 : i32
    return %c0_i32, %c0_i32_0 : i32, i32
  }
  func.func @transform_5(%arg0: i32) -> (i32, i32) {
    %c0_i32 = arith.constant 0 : i32
    %c0_i32_0 = arith.constant 0 : i32
    return %arg0, %c0_i32 : i32, i32
  }
}

</mosaic_0001>

<llo_original>
// kernel: tpu_custom_call.1
$region0: #{tpu_custom_call.1}
  #allocation0 [shape = 'u32[]', space=smem, size = 0x4, offset = 0x4, fixed_abs, tag = 'smem constant byte address 0x4 - core index']
  #allocation1 [shape = 'u32[144,128]{1,0:T(1,128)}', space=vmem, size = 0x12000, scoped, tag = 'internal scratch']
  %s0 = inlined_call_operand.vmem [shape: f32[8,32], index: 0, kind: input, shape index: {}]
  %s1 = inlined_call_operand.hbm [shape: f32[8,32], index: 1, kind: input, shape index: {}]
  %s2 = inlined_call_operand.vmem [shape: f32[1,8], index: 2, kind: input, shape index: {}]
  %s3 = inlined_call_operand.vmem [shape: s32[8,1], index: 3, kind: input, shape index: {}]
  %s4 = inlined_call_operand.vmem [shape: s32[1,8], index: 4, kind: input, shape index: {}]
  %s5 = inlined_call_operand.vmem [shape: f32[8,1], index: 5, kind: output, shape index: {}]
  %s6 = sld [smem:[#allocation0]]
  $region34: #{tpu_custom_call.1} parent=0
    _
  %s8 = ssub.s32 1, %s6
  %s9 = scalar_select 0, %s8, %s6
  $region1: #{tpu_custom_call.1} parent=0
    #allocation2 [shape = 'u8[4096]{0}', space=vmem, size = 0x1000, scoped, tag = 'input window, operand 1, single buffered']
    #allocation3 [shape = 's32[1]{0}', space=sflag, size = 0x4, scoped, tag = 'scoped memory for tpu_custom_call.1']
    %10 = vsyncpa [#allocation3], 0
    // Predicated region
    $region2: #{tpu_custom_call.1} parent=1 // pred_check
      _
    $region3: #{tpu_custom_call.1} parent=1 // pred_check_branch
      %12 = sbr.rel (0) target = $region5
    $region4: #{tpu_custom_call.1} parent=1 // pred_region
      _
    $region5: #{tpu_custom_call.1} parent=1 // pred_fallthru
      _
    // Predicated region
    $region6: #{tpu_custom_call.1} parent=1 // pred_check
      _
    $region7: #{tpu_custom_call.1} parent=1 // pred_check_branch
      %14 = sbr.rel (0) target = $region9
    $region8: #{tpu_custom_call.1} parent=1 // pred_region
      %s16 = ssub.s32 128, 128
      %17 = vsyncadd [#allocation3], %s16
      %s19 = sshll.u32 [#allocation2], 4
      %s20 = int_to_ptr.vmem [resolvable:$true] %s19
      %22 = dma.hbm_to_vmem [thread:$0]  %s1, 128, %s20, [#allocation3]
    $region9: #{tpu_custom_call.1} parent=1 // pred_fallthru
      _
    // Predicated region
    $region10: #{tpu_custom_call.1} parent=1 // pred_check
      _
    $region11: #{tpu_custom_call.1} parent=1 // pred_check_branch
      %24 = sbr.rel (0) target = $region13
    $region12: #{tpu_custom_call.1} parent=1 // pred_region
      _
    $region13: #{tpu_custom_call.1} parent=1 // pred_fallthru
      _
    // Predicated region
    $region14: #{tpu_custom_call.1} parent=1 // pred_check
      _
    $region15: #{tpu_custom_call.1} parent=1 // pred_check_branch
      %26 = sbr.rel (0) target = $region17
    $region16: #{tpu_custom_call.1} parent=1 // pred_region
      _
    $region17: #{tpu_custom_call.1} parent=1 // pred_fallthru
      _
    // Predicated region
    $region18: #{tpu_custom_call.1} parent=1 // pred_check
      _
    $region19: #{tpu_custom_call.1} parent=1 // pred_check_branch
      %28 = sbr.rel (0) target = $region21
    $region20: #{tpu_custom_call.1} parent=1 // pred_region
      _
    $region21: #{tpu_custom_call.1} parent=1 // pred_fallthru
      _
    // Predicated region
    $region22: #{tpu_custom_call.1} parent=1 // pred_check
      _
    $region23: #{tpu_custom_call.1} parent=1 // pred_check_branch
      %30 = sbr.rel (0) target = $region25
    $region24: #{tpu_custom_call.1} parent=1 // pred_region
      %31 = dma.done [#allocation3], 128
    $region25: #{tpu_custom_call.1} parent=1 // pred_fallthru
      _
    %v32 = vld [vmem:[%s0] sm:$0xff]
    %v33 = vld [vmem:[#allocation2] sm:$0xff]
    %vm34 = vcmask 261120
    %v36 = vsel %vm34, %v32, 0
    %v39 = vsel %vm34, %v33, 0
    %41 = vmatprep.subr.mxu0 0.0
    %42 = vmatpush1.xpose.msra.mxu0 0.0
    %43 = vmatprep.subr.mxu0 0.0
    %44 = vmatpush1.xpose.msra.mxu0 0.0
    %45 = vmatprep.subr.mxu0 0.0
    %46 = vmatpush1.xpose.msra.mxu0 0.0
    %47 = vmatprep.subr.mxu0 0.0
    %48 = vmatpush1.xpose.msra.mxu0 0.0
    %49 = vmatprep.subr.mxu0 0.0
    %50 = vmatpush1.xpose.msra.mxu0 0.0
    %51 = vmatprep.subr.mxu0 0.0
    %52 = vmatpush1.xpose.msra.mxu0 0.0
    %53 = vmatprep.subr.mxu0 0.0
    %54 = vmatpush1.xpose.msra.mxu0 0.0
    %55 = vmatprep.subr.mxu0 0.0
    %56 = vmatpush1.xpose.msra.mxu0 0.0
    %57 = vmatprep.subr.mxu0 0.0
    %58 = vmatpush1.xpose.msra.mxu0 0.0
    %59 = vmatprep.subr.mxu0 0.0
    %60 = vmatpush1.xpose.msra.mxu0 0.0
    %61 = vmatprep.subr.mxu0 0.0
    %62 = vmatpush1.xpose.msra.mxu0 0.0
    %63 = vmatprep.subr.mxu0 0.0
    %64 = vmatpush1.xpose.msra.mxu0 0.0
    %65 = vmatprep.subr.mxu0 0.0
    %66 = vmatpush1.xpose.msra.mxu0 0.0
    %67 = vmatprep.subr.mxu0 0.0
    %68 = vmatpush1.xpose.msra.mxu0 0.0
    %69 = vmatprep.subr.mxu0 0.0
    %70 = vmatpush1.xpose.msra.mxu0 0.0
    %71 = vmatprep.subr.mxu0 0.0
    %72 = vmatpush1.xpose.msra.mxu0 %v39
    %73 = vmatprep.subr.mxu0 0.0
    %74 = vmatpush2.xpose.msra.mxu0 0.0
    %75 = vmatprep.subr.mxu0 0.0
    %76 = vmatpush2.xpose.msra.mxu0 0.0
    %77 = vmatprep.subr.mxu0 0.0
    %78 = vmatpush2.xpose.msra.mxu0 0.0
    %79 = vmatprep.subr.mxu0 0.0
    %80 = vmatpush2.xpose.msra.mxu0 0.0
    %81 = vmatprep.subr.mxu0 0.0
    %82 = vmatpush2.xpose.msra.mxu0 0.0
    %83 = vmatprep.subr.mxu0 0.0
    %84 = vmatpush2.xpose.msra.mxu0 0.0
    %85 = vmatprep.subr.mxu0 0.0
    %86 = vmatpush2.xpose.msra.mxu0 0.0
    %87 = vmatprep.subr.mxu0 0.0
    %88 = vmatpush2.xpose.msra.mxu0 0.0
    %89 = vmatprep.subr.mxu0 0.0
    %90 = vmatpush2.xpose.msra.mxu0 0.0
    %91 = vmatprep.subr.mxu0 0.0
    %92 = vmatpush2.xpose.msra.mxu0 0.0
    %93 = vmatprep.subr.mxu0 0.0
    %94 = vmatpush2.xpose.msra.mxu0 0.0
    %95 = vmatprep.subr.mxu0 0.0
    %96 = vmatpush2.xpose.msra.mxu0 0.0
    %97 = vmatprep.subr.mxu0 0.0
    %98 = vmatpush2.xpose.msra.mxu0 0.0
    %99 = vmatprep.subr.mxu0 0.0
    %100 = vmatpush2.xpose.msra.mxu0 0.0
    %101 = vmatprep.subr.mxu0 0.0
    %102 = vmatpush2.xpose.msra.mxu0 0.0
    %103 = vmatprep.subr.mxu0 0.0
    %104 = vmatpush2.xpose.msra.mxu0 0.0
    %105 = vmatprep.mubr.f32.mxu0 0.0
    %106 = vmatmul.mubr.f32.gmra.mxu0 %v36
    %v107 = vpop.f32.mrf.mxu0
    %v108 = vadd.f32 0.0, %v107
    %v109 = vpop.f32.mrf.mxu0
    %110 = vdwg.mxu0
    %v111 = vmul.f32 %v32, %v32
    %v112 = vsel %vm34, %v111, 0.0
    %113 = vadd.xlane.f32.xlu0 %v112
    %v114 = vpop.xlane.xlu0 %113
    %v115 = vld [vmem:[%s2] sm:$0x1]
    %v116 = vmul.f32 %v108, 2.0
    %v118 = vlaneseq
    %v119 = vshrl.u32 %v118, 7
    %v120 = vsub.s32 0, %v119
    %v121 = vrot.slane %v115, %v120
    %v123 = vsub.f32 %v121, %v116
    %v124 = vld [vmem:[%s3] sm:$0xff]
    %v125 = vld [vmem:[%s4] sm:$0x1]
    %126 = vset.pattern.permute.xlu0 0
    %127 = vperm.xlu0 %126, %v124
    %v128 = vpop.permute.xlu0 %127
    %v129 = vlaneseq
    %v130 = vshrl.u32 %v129, 7
    %v131 = vsub.s32 0, %v130
    %v132 = vrot.slane %v125, %v131
    %vm133 = vcmp.eq.s32.totalorder %v128, %v132
    %vm134 = vcmp.ne.s32.totalorder %v128, %v132
    %vm135 = vcmp.ge.s32.totalorder %v125, 0
    %v136 = vsel %vm135, 1, 0
    %v137 = vlaneseq
    %v138 = vshrl.u32 %v137, 7
    %v139 = vsub.s32 0, %v138
    %v140 = vrot.slane %v136, %v139
    %vm141 = vcmp.eq.s32.totalorder %v140, 1
    %vm142 = vmand %vm134, %vm141
    %v143 = vsel %vm133, %v123, -inf
    %vm144 = vcmask 64512
    %v145 = vsel %vm144, %v143, -inf
    %146 = vmax.xlane.f32.xlu0 %v145
    %v147 = vpop.xlane.xlu0 %146
    %v148 = vadd.f32 %v147, %v114
    %v149 = vsel %vm142, %v123, inf
    %v150 = vsel %vm144, %v149, inf
    %151 = vmin.xlane.f32.xlu0 %v150
    %v152 = vpop.xlane.xlu0 %151
    %v153 = vadd.f32 %v152, %v114
    %v154 = vmax.f32 %v148, 1e-12
    %v155 = vrsqrt.pop %v154
    %v156 = vmul.f32 %v154, %v155
    %vm157 = vcmp.eq.f32.partialorder %v154, inf
    %v158 = vsel %vm157, %v154, %v156
    %vm159 = vcmp.eq.f32.partialorder %v154, 0.0
    %v160 = vand.u32 %v154, 2147483648
    %v161 = vsel %vm159, %v160, %v158
    %v162 = vmax.f32 %v153, 1e-12
    %v163 = vrsqrt.pop %v162
    %v164 = vmul.f32 %v162, %v163
    %vm165 = vcmp.eq.f32.partialorder %v162, inf
    %v166 = vsel %vm165, %v162, %v164
    %vm167 = vcmp.eq.f32.partialorder %v162, 0.0
    %v168 = vand.u32 %v162, 2147483648
    %v169 = vsel %vm167, %v168, %v166
    %v170 = vsub.f32 %v161, %v169
    %v171 = vmax.f32 %v170, 0.0
    %v172 = vand.u32 2147483647, %v170
    %v173 = vsub.f32 0.0, %v172
    %v174 = vmul.f32 %v173, 1.442695
    %v175 = vpow.pop %v174
    %v176 = vadd.f32 %v175, 1.0
    %v177 = vlog2.pop %v176
    %v178 = vmul.f32 %v177, 0.6931472
    %v179 = vmul.f32 -0.5, %v175
    %v180 = vadd.f32 %v179, 1.0
    %v181 = vmul.f32 %v180, %v175
    %v182 = vand.u32 2147483647, %v175
    %vm183 = vcmp.lt.f32.partialorder %v182, 0.0004427343
    %v184 = vsel %vm183, %v181, %v178
    %v185 = vadd.f32 %v171, %v184
    %vm186 = vcmp.ge.s32.totalorder %v124, 0
    %v187 = vsel %vm186, %v185, 0.0
    %vm188 = vcmask 7168
    %189 = vst.msk [vmem:[%s5] sm:$0xff] %vm188, %v187
    // Predicated region
    $region26: #{tpu_custom_call.1} parent=1 // pred_check
      _
    $region27: #{tpu_custom_call.1} parent=1 // pred_check_branch
      %191 = sbr.rel (0) target = $region29
    $region28: #{tpu_custom_call.1} parent=1 // pred_region
      _
    $region29: #{tpu_custom_call.1} parent=1 // pred_fallthru
      _
    // Predicated region
    $region30: #{tpu_custom_call.1} parent=1 // pred_check
      _
    $region31: #{tpu_custom_call.1} parent=1 // pred_check_branch
      %193 = sbr.rel (0) target = $region33
    $region32: #{tpu_custom_call.1} parent=1 // pred_region
      _
    $region33: #{tpu_custom_call.1} parent=1 // pred_fallthru
      _
    %194 = vsyncpa [#allocation3], 1

// kernel: tpu_custom_call.1
$region0: #{tpu_custom_call.1}
  #allocation0 [shape = 'u32[]', space=smem, size = 0x4, offset = 0x4, fixed_abs, tag = 'smem constant byte address 0x4 - core index']
  #allocation1 [shape = 'u32[144,128]{1,0:T(1,128)}', space=vmem, size = 0x12000, scoped, tag = 'internal scratch']
  %s0 = inlined_call_operand.vmem [shape: f32[8,32], index: 0, kind: input, shape index: {}]
  %s1 = inlined_call_operand.hbm [shape: f32[8,32], index: 1, kind: input, shape index: {}]
  %s2 = inlined_call_operand.vmem [shape: f32[1,8], index: 2, kind: input, shape index: {}]
  %s3 = inlined_call_operand.vmem [shape: s32[8,1], index: 3, kind: input, shape index: {}]
  %s4 = inlined_call_operand.vmem [shape: s32[1,8], index: 4, kind: input, shape index: {}]
  %s5 = inlined_call_operand.vmem [shape: f32[8,1], index: 5, kind: output, shape index: {}]
  %s6 = sld [smem:[#allocation0]]
  $region34: #{tpu_custom_call.1} parent=0
    _
  %s8 = ssub.s32 1, %s6
  %s9 = scalar_select 0, %s8, %s6
  $region1: #{tpu_custom_call.1} parent=0
    #allocation2 [shape = 'u8[4096]{0}', space=vmem, size = 0x1000, scoped, tag = 'input window, operand 1, single buffered']
    #allocation3 [shape = 's32[1]{0}', space=sflag, size = 0x4, scoped, tag = 'scoped memory for tpu_custom_call.1']
    %10 = vsyncpa [#allocation3], 0
    // Predicated region
    $region2: #{tpu_custom_call.1} parent=1 // pred_check
      _
    $region3: #{tpu_custom_call.1} parent=1 // pred_check_branch
      %12 = sbr.rel (0) target = $region5
    $region4: #{tpu_custom_call.1} parent=1 // pred_region
      _
    $region5: #{tpu_custom_call.1} parent=1 // pred_fallthru
      _
    // Predicated region
    $region6: #{tpu_custom_call.1} parent=1 // pred_check
      _
    $region7: #{tpu_custom_call.1} parent=1 // pred_check_branch
      %14 = sbr.rel (0) target = $region9
    $region8: #{tpu_custom_call.1} parent=1 // pred_region
      %s16 = ssub.s32 128, 128
      %17 = vsyncadd [#allocation3], %s16
      %s19 = sshll.u32 [#allocation2], 4
      %s20 = int_to_ptr.vmem [resolvable:$true] %s19
      %22 = dma.hbm_to_vmem [thread:$0]  %s1, 128, %s20, [#allocation3]
    $region9: #{tpu_custom_call.1} parent=1 // pred_fallthru
      _
    // Predicated region
    $region10: #{tpu_custom_call.1} parent=1 // pred_check
      _
    $region11: #{tpu_custom_call.1} parent=1 // pred_check_branch
      %24 = sbr.rel (0) target = $region13
    $region12: #{tpu_custom_call.1} parent=1 // pred_region
      _
    $region13: #{tpu_custom_call.1} parent=1 // pred_fallthru
      _
    // Predicated region
    $region14: #{tpu_custom_call.1} parent=1 // pred_check
      _
    $region15: #{tpu_custom_call.1} parent=1 // pred_check_branch
      %26 = sbr.rel (0) target = $region17
    $region16: #{tpu_custom_call.1} parent=1 // pred_region
      _
    $region17: #{tpu_custom_call.1} parent=1 // pred_fallthru
      _
    // Predicated region
    $region18: #{tpu_custom_call.1} parent=1 // pred_check
      _
    $region19: #{tpu_custom_call.1} parent=1 // pred_check_branch
      %28 = sbr.rel (0) target = $region21
    $region20: #{tpu_custom_call.1} parent=1 // pred_region
      _
    $region21: #{tpu_custom_call.1} parent=1 // pred_fallthru
      _
    // Predicated region
    $region22: #{tpu_custom_call.1} parent=1 // pred_check
      _
    $region23: #{tpu_custom_call.1} parent=1 // pred_check_branch
      %30 = sbr.rel (0) target = $region25
    $region24: #{tpu_custom_call.1} parent=1 // pred_region
      %31 = dma.done [#allocation3], 128
    $region25: #{tpu_custom_call.1} parent=1 // pred_fallthru
      _
    %v32 = vld [vmem:[%s0] sm:$0xff]
    %v33 = vld [vmem:[#allocation2] sm:$0xff]
    %vm34 = vcmask 261120
    %v36 = vsel %vm34, %v32, 0
    %v39 = vsel %vm34, %v33, 0
    %41 = vmatprep.subr.mxu0 0.0
    %42 = vmatpush1.xpose.msra.mxu0 0.0
    %43 = vmatprep.subr.mxu0 0.0
    %44 = vmatpush1.xpose.msra.mxu0 0.0
    %45 = vmatprep.subr.mxu0 0.0
    %46 = vmatpush1.xpose.msra.mxu0 0.0
    %47 = vmatprep.subr.mxu0 0.0
    %48 = vmatpush1.xpose.msra.mxu0 0.0
    %49 = vmatprep.subr.mxu0 0.0
    %50 = vmatpush1.xpose.msra.mxu0 0.0
    %51 = vmatprep.subr.mxu0 0.0
    %52 = vmatpush1.xpose.msra.mxu0 0.0
    %53 = vmatprep.subr.mxu0 0.0
    %54 = vmatpush1.xpose.msra.mxu0 0.0
    %55 = vmatprep.subr.mxu0 0.0
    %56 = vmatpush1.xpose.msra.mxu0 0.0
    %57 = vmatprep.subr.mxu0 0.0
    %58 = vmatpush1.xpose.msra.mxu0 0.0
    %59 = vmatprep.subr.mxu0 0.0
    %60 = vmatpush1.xpose.msra.mxu0 0.0
    %61 = vmatprep.subr.mxu0 0.0
    %62 = vmatpush1.xpose.msra.mxu0 0.0
    %63 = vmatprep.subr.mxu0 0.0
    %64 = vmatpush1.xpose.msra.mxu0 0.0
    %65 = vmatprep.subr.mxu0 0.0
    %66 = vmatpush1.xpose.msra.mxu0 0.0
    %67 = vmatprep.subr.mxu0 0.0
    %68 = vmatpush1.xpose.msra.mxu0 0.0
    %69 = vmatprep.subr.mxu0 0.0
    %70 = vmatpush1.xpose.msra.mxu0 0.0
    %71 = vmatprep.subr.mxu0 0.0
    %72 = vmatpush1.xpose.msra.mxu0 %v39
    %73 = vmatprep.subr.mxu0 0.0
    %74 = vmatpush2.xpose.msra.mxu0 0.0
    %75 = vmatprep.subr.mxu0 0.0
    %76 = vmatpush2.xpose.msra.mxu0 0.0
    %77 = vmatprep.subr.mxu0 0.0
    %78 = vmatpush2.xpose.msra.mxu0 0.0
    %79 = vmatprep.subr.mxu0 0.0
    %80 = vmatpush2.xpose.msra.mxu0 0.0
    %81 = vmatprep.subr.mxu0 0.0
    %82 = vmatpush2.xpose.msra.mxu0 0.0
    %83 = vmatprep.subr.mxu0 0.0
    %84 = vmatpush2.xpose.msra.mxu0 0.0
    %85 = vmatprep.subr.mxu0 0.0
    %86 = vmatpush2.xpose.msra.mxu0 0.0
    %87 = vmatprep.subr.mxu0 0.0
    %88 = vmatpush2.xpose.msra.mxu0 0.0
    %89 = vmatprep.subr.mxu0 0.0
    %90 = vmatpush2.xpose.msra.mxu0 0.0
    %91 = vmatprep.subr.mxu0 0.0
    %92 = vmatpush2.xpose.msra.mxu0 0.0
    %93 = vmatprep.subr.mxu0 0.0
    %94 = vmatpush2.xpose.msra.mxu0 0.0
    %95 = vmatprep.subr.mxu0 0.0
    %96 = vmatpush2.xpose.msra.mxu0 0.0
    %97 = vmatprep.subr.mxu0 0.0
    %98 = vmatpush2.xpose.msra.mxu0 0.0
    %99 = vmatprep.subr.mxu0 0.0
    %100 = vmatpush2.xpose.msra.mxu0 0.0
    %101 = vmatprep.subr.mxu0 0.0
    %102 = vmatpush2.xpose.msra.mxu0 0.0
    %103 = vmatprep.subr.mxu0 0.0
    %104 = vmatpush2.xpose.msra.mxu0 0.0
    %105 = vmatprep.mubr.f32.mxu0 0.0
    %106 = vmatmul.mubr.f32.gmra.mxu0 %v36
    %v107 = vpop.f32.mrf.mxu0
    %v108 = vadd.f32 0.0, %v107
    %v109 = vpop.f32.mrf.mxu0
    %110 = vdwg.mxu0
    %v111 = vmul.f32 %v32, %v32
    %v112 = vsel %vm34, %v111, 0.0
    %113 = vadd.xlane.f32.xlu0 %v112
    %v114 = vpop.xlane.xlu0 %113
    %v115 = vld [vmem:[%s2] sm:$0x1]
    %v116 = vmul.f32 %v108, 2.0
    %v118 = vlaneseq
    %v119 = vshrl.u32 %v118, 7
    %v120 = vsub.s32 0, %v119
    %v121 = vrot.slane %v115, %v120
    %v123 = vsub.f32 %v121, %v116
    %v124 = vld [vmem:[%s3] sm:$0xff]
    %v125 = vld [vmem:[%s4] sm:$0x1]
    %126 = vset.pattern.permute.xlu0 0
    %127 = vperm.xlu0 %126, %v124
    %v128 = vpop.permute.xlu0 %127
    %v129 = vlaneseq
    %v130 = vshrl.u32 %v129, 7
    %v131 = vsub.s32 0, %v130
    %v132 = vrot.slane %v125, %v131
    %vm133 = vcmp.eq.s32.totalorder %v128, %v132
    %vm134 = vcmp.ne.s32.totalorder %v128, %v132
    %vm135 = vcmp.ge.s32.totalorder %v125, 0
    %v136 = vsel %vm135, 1, 0
    %v137 = vlaneseq
    %v138 = vshrl.u32 %v137, 7
    %v139 = vsub.s32 0, %v138
    %v140 = vrot.slane %v136, %v139
    %vm141 = vcmp.eq.s32.totalorder %v140, 1
    %vm142 = vmand %vm134, %vm141
    %v143 = vsel %vm133, %v123, -inf
    %vm144 = vcmask 64512
    %v145 = vsel %vm144, %v143, -inf
    %146 = vmax.xlane.f32.xlu0 %v145
    %v147 = vpop.xlane.xlu0 %146
    %v148 = vadd.f32 %v147, %v114
    %v149 = vsel %vm142, %v123, inf
    %v150 = vsel %vm144, %v149, inf
    %151 = vmin.xlane.f32.xlu0 %v150
    %v152 = vpop.xlane.xlu0 %151
    %v153 = vadd.f32 %v152, %v114
    %v154 = vmax.f32 %v148, 1e-12
    %v155 = vrsqrt.pop %v154
    %v156 = vmul.f32 %v154, %v155
    %vm157 = vcmp.eq.f32.partialorder %v154, inf
    %v158 = vsel %vm157, %v154, %v156
    %vm159 = vcmp.eq.f32.partialorder %v154, 0.0
    %v160 = vand.u32 %v154, 2147483648
    %v161 = vsel %vm159, %v160, %v158
    %v162 = vmax.f32 %v153, 1e-12
    %v163 = vrsqrt.pop %v162
    %v164 = vmul.f32 %v162, %v163
    %vm165 = vcmp.eq.f32.partialorder %v162, inf
    %v166 = vsel %vm165, %v162, %v164
    %vm167 = vcmp.eq.f32.partialorder %v162, 0.0
    %v168 = vand.u32 %v162, 2147483648
    %v169 = vsel %vm167, %v168, %v166
    %v170 = vsub.f32 %v161, %v169
    %v171 = vmax.f32 %v170, 0.0
    %v172 = vand.u32 2147483647, %v170
    %v173 = vsub.f32 0.0, %v172
    %v174 = vmul.f32 %v173, 1.442695
    %v175 = vpow.pop %v174
    %v176 = vadd.f32 %v175, 1.0
    %v177 = vlog2.pop %v176
    %v178 = vmul.f32 %v177, 0.6931472
    %v179 = vmul.f32 -0.5, %v175
    %v180 = vadd.f32 %v179, 1.0
    %v181 = vmul.f32 %v180, %v175
    %v182 = vand.u32 2147483647, %v175
    %vm183 = vcmp.lt.f32.partialorder %v182, 0.0004427343
    %v184 = vsel %vm183, %v181, %v178
    %v185 = vadd.f32 %v171, %v184
    %vm186 = vcmp.ge.s32.totalorder %v124, 0
    %v187 = vsel %vm186, %v185, 0.0
    %vm188 = vcmask 7168
    %189 = vst.msk [vmem:[%s5] sm:$0xff] %vm188, %v187
    // Predicated region
    $region26: #{tpu_custom_call.1} parent=1 // pred_check
      _
    $region27: #{tpu_custom_call.1} parent=1 // pred_check_branch
      %191 = sbr.rel (0) target = $region29
    $region28: #{tpu_custom_call.1} parent=1 // pred_region
      _
    $region29: #{tpu_custom_call.1} parent=1 // pred_fallthru
      _
    // Predicated region
    $region30: #{tpu_custom_call.1} parent=1 // pred_check
      _
    $region31: #{tpu_custom_call.1} parent=1 // pred_check_branch
      %193 = sbr.rel (0) target = $region33
    $region32: #{tpu_custom_call.1} parent=1 // pred_region
      _
    $region33: #{tpu_custom_call.1} parent=1 // pred_fallthru
      _
    %194 = vsyncpa [#allocation3], 1

</llo_original>
